<compile_context>
chip_gen: v7x
topology: tpu7x:2x2x1
jax: 0.10.0
libtpu: 0.0.40
codegen_flags: <defaults>
</compile_context>

<pallas_src>
import functools

import jax
import jax.numpy as jnp
from jax import lax
from jax.experimental import pallas as pl
from jax.experimental.pallas import tpu as pltpu


def _gdecoder_kernel(cell_ref, drug_ref, out_ref, *, gamma):
    # ---- cell-side: center rows, fold gamma * rsqrt(row sum of squares) -----
    x = cell_ref[...]                                        # (TM, D) f32
    x_c = x - jnp.mean(x, axis=1, keepdims=True)
    inv_sx = lax.rsqrt(jnp.sum(x_c * x_c, axis=1, keepdims=True)) * gamma
    x_s = (x_c * inv_sx).astype(jnp.bfloat16)                # bf16 MXU operand

    # ---- drug-side: center rows, fold rsqrt(row sum of squares) -------------
    d = drug_ref[...]                                        # (Nd, D) f32
    d_c = d - jnp.mean(d, axis=1, keepdims=True)
    inv_sd = lax.rsqrt(jnp.sum(d_c * d_c, axis=1, keepdims=True))
    d_s = (d_c * inv_sd).astype(jnp.bfloat16)                # bf16 MXU operand

    # gamma * corr = (gamma * Xc / ||Xc||) @ (Yc / ||Yc||)^T, expressed as a
    # contraction on dim 1 of both operands (no materialized transpose),
    # bf16 inputs with f32 accumulation on the MXU.
    out_ref[...] = lax.dot_general(
        x_s, d_s,
        dimension_numbers=(((1,), (1,)), ((), ())),
        preferred_element_type=jnp.float32)


def _round_up(n, m):
    return ((n + m - 1) // m) * m


def gdecoder_regression(cell_emb, drug_emb, gamma, *, tile_m=128):
    """cell_emb: (n_cell, D) f32, drug_emb: (n_drug, D) f32 -> (n_cell, n_drug) f32."""
    M, D = cell_emb.shape
    N, D2 = drug_emb.shape
    assert D == D2, "feature dims must match"

    tile_m = min(tile_m, _round_up(M, 8))
    Mp = _round_up(M, tile_m)          # cell rows padded to a whole tile count
    Np = _round_up(N, 128)             # lane-dense output columns

    cell_p = cell_emb if Mp == M else jnp.pad(cell_emb, ((0, Mp - M), (0, 0)))
    drug_p = drug_emb if Np == N else jnp.pad(drug_emb, ((0, Np - N), (0, 0)))

    out = pl.pallas_call(
        functools.partial(_gdecoder_kernel, gamma=float(gamma)),
        out_shape=jax.ShapeDtypeStruct((Mp, Np), jnp.float32),
        grid=(Mp // tile_m,),
        in_specs=[
            pl.BlockSpec((tile_m, D), lambda i: (i, 0)),   # cell tile per step
            pl.BlockSpec((Np, D), lambda i: (0, 0)),       # drug matrix resident
        ],
        out_specs=pl.BlockSpec((tile_m, Np), lambda i: (i, 0)),
        compiler_params=pltpu.CompilerParams(
            dimension_semantics=("parallel",)),            # v7x: shard across 2 TCs
    )(cell_p, drug_p)

    return out[:M, :N]


def _ref(cell_emb, drug_emb, gamma):
    """Pure-JAX (f32) reference of torch_corr_x_y(cell, drug) * gamma."""
    xc = cell_emb - jnp.mean(cell_emb, axis=1, keepdims=True)
    yc = drug_emb - jnp.mean(drug_emb, axis=1, keepdims=True)
    lxy = xc @ yc.T
    sx = jnp.sqrt(jnp.sum(xc * xc, axis=1))
    sy = jnp.sqrt(jnp.sum(yc * yc, axis=1))
    return gamma * lxy / (sx[:, None] * sy[None, :])


if __name__ == "__main__":
    GAMMA = 0.75
    N_CELL, N_DRUG, DIM = 256, 128, 64   # small, lane-aligned demo shapes

    root = jax.random.PRNGKey(0)
    kc, kd = jax.random.split(root, 2)
    cell_emb = jax.random.normal(kc, (N_CELL, DIM), jnp.float32)
    drug_emb = jax.random.normal(kd, (N_DRUG, DIM), jnp.float32)

    out = gdecoder_regression(cell_emb, drug_emb, GAMMA)
    out = jax.block_until_ready(out)

    ref = _ref(cell_emb, drug_emb, GAMMA)
    assert out.shape == (N_CELL, N_DRUG)
    # bf16 MXU operands with f32 accumulation -> relaxed tolerance.
    assert jnp.allclose(out, ref, atol=2e-2, rtol=2e-2), "mismatch vs pure-JAX reference"

    print("KERNEL_OK")
</pallas_src>

<mosaic_0001>
module attributes {stable_mosaic.version = 11 : i64} {
  func.func @_gdecoder_kernel(%arg0: i32, %arg1: memref<128x64xf32, #tpu.memory_space<vmem>>, %arg2: memref<128x64xf32, #tpu.memory_space<vmem>>, %arg3: memref<128x128xf32, #tpu.memory_space<vmem>>) attributes {dimension_semantics = [#tpu.dimension_semantics<parallel>], iteration_bounds = array<i64: 2>, scalar_prefetch = 0 : i64, scratch_operands = 0 : i64, tpu.core_type = #tpu.core_type<tc>, window_params = [{transform_indices = @transform_0, window_bounds = array<i64: 128, 64>}, {pipeline_mode = #tpu.pipeline_mode<synchronous>, transform_indices = @transform_1, window_bounds = array<i64: 128, 64>}, {transform_indices = @transform_2, window_bounds = array<i64: 128, 128>}]} {
    %c0 = arith.constant 0 : index
    %c0_0 = arith.constant 0 : index
    %0 = vector.load %arg1[%c0, %c0_0] : memref<128x64xf32, #tpu.memory_space<vmem>>, vector<128x64xf32>
    %cst = arith.constant dense<0.000000e+00> : vector<128xf32>
    %1 = vector.multi_reduction <add>, %0, %cst [1] : vector<128x64xf32> to vector<128xf32>
    %2 = vector.shape_cast %1 : vector<128xf32> to vector<128x1xf32>
    %cst_1 = arith.constant 6.400000e+01 : f32
    %3 = vector.broadcast %cst_1 : f32 to vector<128x1xf32>
    %4 = arith.divf %2, %3 : vector<128x1xf32>
    %5 = vector.broadcast %4 : vector<128x1xf32> to vector<128x64xf32>
    %6 = arith.subf %0, %5 : vector<128x64xf32>
    %7 = arith.mulf %6, %6 : vector<128x64xf32>
    %cst_2 = arith.constant dense<0.000000e+00> : vector<128xf32>
    %8 = vector.multi_reduction <add>, %7, %cst_2 [1] : vector<128x64xf32> to vector<128xf32>
    %9 = vector.shape_cast %8 : vector<128xf32> to vector<128x1xf32>
    %10 = math.rsqrt %9 : vector<128x1xf32>
    %cst_3 = arith.constant 7.500000e-01 : f32
    %11 = vector.broadcast %cst_3 : f32 to vector<128x1xf32>
    %12 = arith.mulf %10, %11 : vector<128x1xf32>
    %13 = vector.broadcast %12 : vector<128x1xf32> to vector<128x64xf32>
    %14 = arith.mulf %6, %13 : vector<128x64xf32>
    %15 = arith.truncf %14 : vector<128x64xf32> to vector<128x64xbf16>
    %c0_4 = arith.constant 0 : index
    %c0_5 = arith.constant 0 : index
    %16 = vector.load %arg2[%c0_4, %c0_5] : memref<128x64xf32, #tpu.memory_space<vmem>>, vector<128x64xf32>
    %cst_6 = arith.constant dense<0.000000e+00> : vector<128xf32>
    %17 = vector.multi_reduction <add>, %16, %cst_6 [1] : vector<128x64xf32> to vector<128xf32>
    %18 = vector.shape_cast %17 : vector<128xf32> to vector<128x1xf32>
    %cst_7 = arith.constant 6.400000e+01 : f32
    %19 = vector.broadcast %cst_7 : f32 to vector<128x1xf32>
    %20 = arith.divf %18, %19 : vector<128x1xf32>
    %21 = vector.broadcast %20 : vector<128x1xf32> to vector<128x64xf32>
    %22 = arith.subf %16, %21 : vector<128x64xf32>
    %23 = arith.mulf %22, %22 : vector<128x64xf32>
    %cst_8 = arith.constant dense<0.000000e+00> : vector<128xf32>
    %24 = vector.multi_reduction <add>, %23, %cst_8 [1] : vector<128x64xf32> to vector<128xf32>
    %25 = vector.shape_cast %24 : vector<128xf32> to vector<128x1xf32>
    %26 = math.rsqrt %25 : vector<128x1xf32>
    %27 = vector.broadcast %26 : vector<128x1xf32> to vector<128x64xf32>
    %28 = arith.mulf %22, %27 : vector<128x64xf32>
    %29 = arith.truncf %28 : vector<128x64xf32> to vector<128x64xbf16>
    %cst_9 = arith.constant dense<0.000000e+00> : vector<128x128xf32>
    %30 = tpu.matmul %15, %29, %cst_9 {dimension_numbers = #tpu.dot_dimension_numbers<[1], [1], [0], [0], [0, 0, 1, 0], [], []>} : vector<128x64xbf16>, vector<128x64xbf16>, vector<128x128xf32> -> vector<128x128xf32>
    %c0_10 = arith.constant 0 : index
    %c0_11 = arith.constant 0 : index
    %31 = vector.load %arg3[%c0_10, %c0_11] : memref<128x128xf32, #tpu.memory_space<vmem>>, vector<128x128xf32>
    tpu.vector_store %arg3[%c0_10, %c0_11], %30 {strides = array<i32>} : memref<128x128xf32, #tpu.memory_space<vmem>>, vector<128x128xf32>,
    return
  }
  func.func @transform_0(%arg0: i32) -> (i32, i32) {
    %c0_i32 = arith.constant 0 : i32
    %c0_i32_0 = arith.constant 0 : i32
    return %arg0, %c0_i32 : i32, i32
  }
  func.func @transform_1(%arg0: i32) -> (i32, i32) {
    %c0_i32 = arith.constant 0 : i32
    %c0_i32_0 = arith.constant 0 : i32
    %c0_i32_1 = arith.constant 0 : i32
    return %c0_i32, %c0_i32_0 : i32, i32
  }
  func.func @transform_2(%arg0: i32) -> (i32, i32) {
    %c0_i32 = arith.constant 0 : i32
    %c0_i32_0 = arith.constant 0 : i32
    return %arg0, %c0_i32 : i32, i32
  }
}

</mosaic_0001>

<llo_original>
// kernel: tpu_custom_call.1
$region0: #{tpu_custom_call.1}
  #allocation0 [shape = 'u32[]', space=smem, size = 0x4, offset = 0x4, fixed_abs, tag = 'smem constant byte address 0x4 - core index']
  #allocation1 [shape = 'u32[144,128]{1,0:T(1,128)}', space=vmem, size = 0x12000, scoped, tag = 'internal scratch']
  %s0 = inlined_call_operand.vmem [shape: f32[256,64], index: 0, kind: input, shape index: {}]
  %s1 = inlined_call_operand.vmem [shape: f32[128,64], index: 1, kind: input, shape index: {}]
  %s2 = inlined_call_operand.hbm [shape: f32[256,128], index: 2, kind: output, shape index: {}]
  %s3 = sld [smem:[#allocation0]]
  $region41: #{tpu_custom_call.1} parent=0
    _
  %s5 = ssub.s32 1, %s3
  %s6 = scalar_select 0, %s5, %s3
  $region1: #{tpu_custom_call.1} parent=0
    #allocation2 [shape = 'u8[131072]{0}', space=vmem, size = 0x20000, scoped, tag = 'output window, operand 0']
    #allocation3 [shape = 's32[2]{0}', space=sflag, size = 0x8, scoped, tag = 'scoped memory for tpu_custom_call.1']
    %7 = vsyncpa [#allocation3], 0
    %s8 = scalar_lea.sflag [#allocation3], 1
    %9 = vsyncpa %s8, 0
    loop: start=0, step=1, limit=4
    $region2: #{tpu_custom_call.1} parent=1 // loop_pre_header
      _
    $region3: #{tpu_custom_call.1} parent=1 // loop_header
      %s11 = sphi 0, %s15
      %p12 = scmp.ge.s32.totalorder %s11, 4
      %s21 = sphi 0, %s23
      %s24 = sphi 0, %s21
      %s25 = sphi 0, %s24
      %s41 = sphi 0, %s25
      %s45 = sphi 0, %s45
      %s47 = sphi 0, %s45
      %s48 = sphi 0, %s47
      %s62 = sphi 0, %s48
      %s68 = sphi 0, %s70
      %s71 = sphi 0, %s68
      %s72 = sphi 0, %s71
      %s88 = sphi 0, %s72
    $region4: #{tpu_custom_call.1} parent=1 // loop_header_branch
      %14 = sbr.rel (%p12) target = $region8
    $region5: #{tpu_custom_call.1} parent=1 // loop_body
      %s16 = ssub.s32 %s11, 1
      %s17 = ssub.s32 %s11, 2
      %s18 = sadd.s32 %s11, 1
      %s19 = ssub.s32 %s11, %s18
      %p20 = scmp.eq.s32.totalorder %s19, 0
      %s22 = sadd.s32 %s21, 1
      %s23 = scalar_select %p20, %s21, %s22
      %p26 = pneg %p20
      %p27 = scmp.eq.s32.totalorder %s11, 1
      %p28 = por %p26, %p27
      %p29 = scmp.ne.s32.totalorder %s21, %s24
      %p30 = scmp.eq.s32.totalorder %s11, 0
      %p31 = por %p29, %p30
      %p32 = scmp.ne.s32.totalorder %s21, %s24
      %p33 = scmp.eq.s32.totalorder %s16, 1
      %p34 = por %p32, %p33
      %p35 = scmp.ne.s32.totalorder %s24, %s25
      %p36 = scmp.eq.s32.totalorder %s16, 0
      %p37 = por %p35, %p36
      %p38 = scmp.ne.s32.totalorder %s24, %s25
      %p39 = scmp.eq.s32.totalorder %s17, 1
      %p40 = por %p38, %p39
      %p42 = scmp.ne.s32.totalorder %s25, %s41
      %p43 = scmp.eq.s32.totalorder %s17, 0
      %p44 = por %p42, %p43
      %s46 = sadd.s32 %s45, 1
      %p49 = scmp.eq.s32.totalorder %s11, 1
      %p50 = scmp.ne.s32.totalorder %s45, %s47
      %p51 = scmp.eq.s32.totalorder %s11, 0
      %p52 = por %p50, %p51
      %p53 = scmp.ne.s32.totalorder %s45, %s47
      %p54 = scmp.eq.s32.totalorder %s16, 1
      %p55 = por %p53, %p54
      %p56 = scmp.ne.s32.totalorder %s47, %s48
      %p57 = scmp.eq.s32.totalorder %s16, 0
      %p58 = por %p56, %p57
      %p59 = scmp.ne.s32.totalorder %s47, %s48
      %p60 = scmp.eq.s32.totalorder %s17, 1
      %p61 = por %p59, %p60
      %p63 = scmp.ne.s32.totalorder %s48, %s62
      %p64 = scmp.eq.s32.totalorder %s17, 0
      %p65 = por %p63, %p64
      %s66 = ssub.s32 %s11, %s18
      %p67 = scmp.eq.s32.totalorder %s66, 0
      %s69 = sadd.s32 %s68, 1
      %s70 = scalar_select %p67, %s68, %s69
      %p73 = pneg %p67
      %p74 = scmp.eq.s32.totalorder %s11, 1
      %p75 = por %p73, %p74
      %p76 = scmp.ne.s32.totalorder %s68, %s71
      %p77 = scmp.eq.s32.totalorder %s11, 0
      %p78 = por %p76, %p77
      %p79 = scmp.ne.s32.totalorder %s68, %s71
      %p80 = scmp.eq.s32.totalorder %s16, 1
      %p81 = por %p79, %p80
      %p82 = scmp.ne.s32.totalorder %s71, %s72
      %p83 = scmp.eq.s32.totalorder %s16, 0
      %p84 = por %p82, %p83
      %p85 = scmp.ne.s32.totalorder %s71, %s72
      %p86 = scmp.eq.s32.totalorder %s17, 1
      %p87 = por %p85, %p86
      %p89 = scmp.ne.s32.totalorder %s72, %s88
      %p90 = scmp.eq.s32.totalorder %s17, 0
      %p91 = por %p89, %p90
      %p92 = scmp.le.s32.totalorder 1, %s11
      %p93 = scmp.lt.s32.totalorder %s11, 3
      %p94 = pnand %p92, %p93
      %p95 = pneg %p94
      // Predicated region
      $region9: #{tpu_custom_call.1} parent=5 // pred_check
        _
      $region10: #{tpu_custom_call.1} parent=5 // pred_check_branch
        %97 = sbr.rel (%p94) target = $region12
      $region11: #{tpu_custom_call.1} parent=5 // pred_region
        %s98 = ssub.s32 %s11, 1
        // Predicated region
        $region13: #{tpu_custom_call.1} parent=11 // pred_check
          %p99 = pneg %p58
        $region14: #{tpu_custom_call.1} parent=11 // pred_check_branch
          %101 = sbr.rel (%p99) target = $region16
        $region15: #{tpu_custom_call.1} parent=11 // pred_region
          _
        $region16: #{tpu_custom_call.1} parent=11 // pred_fallthru
          _
      $region12: #{tpu_custom_call.1} parent=5 // pred_fallthru
        _
      %p102 = scmp.lt.s32.totalorder %s11, 2
      // Predicated region
      $region17: #{tpu_custom_call.1} parent=5 // pred_check
        %p103 = pneg %p102
      $region18: #{tpu_custom_call.1} parent=5 // pred_check_branch
        %105 = sbr.rel (%p103) target = $region20
      $region19: #{tpu_custom_call.1} parent=5 // pred_region
        // Predicated region
        $region21: #{tpu_custom_call.1} parent=19 // pred_check
          %p106 = pneg %p31
        $region22: #{tpu_custom_call.1} parent=19 // pred_check_branch
          %108 = sbr.rel (%p106) target = $region24
        $region23: #{tpu_custom_call.1} parent=19 // pred_region
          %s109 = smul.u32 16, %s11
          %p110 = scmp.lt.s32.totalorder %s109, 31
          %s111 = scalar_select %p110, %s109, 31
          %s112 = smul.addr %s111, 8
          %s113 = scalar_lea.vmem %s0, %s112
          %s114 = smul.u32 16, %s11
        $region24: #{tpu_custom_call.1} parent=19 // pred_fallthru
          _
      $region20: #{tpu_custom_call.1} parent=5 // pred_fallthru
        _
      %p115 = scmp.le.s32.totalorder 1, %s11
      %p116 = scmp.lt.s32.totalorder %s11, 3
      %p117 = pnand %p115, %p116
      %p118 = pneg %p117
      // Predicated region
      $region25: #{tpu_custom_call.1} parent=5 // pred_check
        _
      $region26: #{tpu_custom_call.1} parent=5 // pred_check_branch
        %120 = sbr.rel (%p117) target = $region28
      $region27: #{tpu_custom_call.1} parent=5 // pred_region
        %s121 = ssub.s32 %s11, 1
        %s122 = smul.u32 16, %s16
        %p123 = scmp.lt.s32.totalorder %s122, 31
        %s124 = scalar_select %p123, %s122, 31
        %s125 = smul.addr %s124, 8
        %s126 = scalar_lea.vmem %s0, %s125
        %p127 = pneg %p37
        %p128 = pneg %p34
        %p129 = pneg %p58
        %p130 = pneg %p55
        %p131 = pneg %p84
        %p132 = pneg %p81
        %s133 = sand.u32 %s71, 1
        %s134 = scalar_lea.sflag [#allocation3], %s133
        %s135 = sand.u32 %s71, 1
        %s136 = smul.addr %s135, 128
        %s137 = scalar_lea.vmem [#allocation2], %s136
        %s138 = smul.u32 16, %s16
        %p139 = scmp.lt.s32.totalorder %s138, 31
        %s140 = scalar_select %p139, %s138, 31
        %s141 = smul.addr %s140, 8
        %s142 = scalar_lea.vmem %s0, %s141
        %s143 = smul.u32 16, %s16
        %s144 = smul.u32 16, %s16
        %v146 = vld [vmem:[%s142] sm:$0xff]
        %v147 = vld [vmem:[%s142 + $0x8] sm:$0xff]
        %v148 = vld [vmem:[%s142 + $0x10] sm:$0xff]
        %v149 = vld [vmem:[%s142 + $0x18] sm:$0xff]
        %v150 = vld [vmem:[%s142 + $0x20] sm:$0xff]
        %v151 = vld [vmem:[%s142 + $0x28] sm:$0xff]
        %v152 = vld [vmem:[%s142 + $0x30] sm:$0xff]
        %v153 = vld [vmem:[%s142 + $0x38] sm:$0xff]
        %v154 = vld [vmem:[%s142 + $0x40] sm:$0xff]
        %v155 = vld [vmem:[%s142 + $0x48] sm:$0xff]
        %v156 = vld [vmem:[%s142 + $0x50] sm:$0xff]
        %v157 = vld [vmem:[%s142 + $0x58] sm:$0xff]
        %v158 = vld [vmem:[%s142 + $0x60] sm:$0xff]
        %v159 = vld [vmem:[%s142 + $0x68] sm:$0xff]
        %v160 = vld [vmem:[%s142 + $0x70] sm:$0xff]
        %v161 = vld [vmem:[%s142 + $0x78] sm:$0xff]
        %vm162 = vcmask 523264
        %v163 = vsel %vm162, %v146, 0.0
        %164 = vadd.xlane.f32.xlu0 %v163
        %v165 = vpop.xlane.xlu0 %164
        %v166 = vsel %vm162, %v147, 0.0
        %167 = vadd.xlane.f32.xlu0 %v166
        %v168 = vpop.xlane.xlu0 %167
        %v169 = vsel %vm162, %v148, 0.0
        %170 = vadd.xlane.f32.xlu0 %v169
        %v171 = vpop.xlane.xlu0 %170
        %v172 = vsel %vm162, %v149, 0.0
        %173 = vadd.xlane.f32.xlu0 %v172
        %v174 = vpop.xlane.xlu0 %173
        %v175 = vsel %vm162, %v150, 0.0
        %176 = vadd.xlane.f32.xlu0 %v175
        %v177 = vpop.xlane.xlu0 %176
        %v178 = vsel %vm162, %v151, 0.0
        %179 = vadd.xlane.f32.xlu0 %v178
        %v180 = vpop.xlane.xlu0 %179
        %v181 = vsel %vm162, %v152, 0.0
        %182 = vadd.xlane.f32.xlu0 %v181
        %v183 = vpop.xlane.xlu0 %182
        %v184 = vsel %vm162, %v153, 0.0
        %185 = vadd.xlane.f32.xlu0 %v184
        %v186 = vpop.xlane.xlu0 %185
        %v187 = vsel %vm162, %v154, 0.0
        %188 = vadd.xlane.f32.xlu0 %v187
        %v189 = vpop.xlane.xlu0 %188
        %v190 = vsel %vm162, %v155, 0.0
        %191 = vadd.xlane.f32.xlu0 %v190
        %v192 = vpop.xlane.xlu0 %191
        %v193 = vsel %vm162, %v156, 0.0
        %194 = vadd.xlane.f32.xlu0 %v193
        %v195 = vpop.xlane.xlu0 %194
        %v196 = vsel %vm162, %v157, 0.0
        %197 = vadd.xlane.f32.xlu0 %v196
        %v198 = vpop.xlane.xlu0 %197
        %v199 = vsel %vm162, %v158, 0.0
        %200 = vadd.xlane.f32.xlu0 %v199
        %v201 = vpop.xlane.xlu0 %200
        %v202 = vsel %vm162, %v159, 0.0
        %203 = vadd.xlane.f32.xlu0 %v202
        %v204 = vpop.xlane.xlu0 %203
        %v205 = vsel %vm162, %v160, 0.0
        %206 = vadd.xlane.f32.xlu0 %v205
        %v207 = vpop.xlane.xlu0 %206
        %v208 = vsel %vm162, %v161, 0.0
        %209 = vadd.xlane.f32.xlu0 %v208
        %v210 = vpop.xlane.xlu0 %209
        %v211 = vrcp.pop 64.0
        %v212 = vmul.f32 %v165, %v211
        %v213 = vmul.f32 %v168, %v211
        %v214 = vmul.f32 %v171, %v211
        %v215 = vmul.f32 %v174, %v211
        %v216 = vmul.f32 %v177, %v211
        %v217 = vmul.f32 %v180, %v211
        %v218 = vmul.f32 %v183, %v211
        %v219 = vmul.f32 %v186, %v211
        %v220 = vmul.f32 %v189, %v211
        %v221 = vmul.f32 %v192, %v211
        %v222 = vmul.f32 %v195, %v211
        %v223 = vmul.f32 %v198, %v211
        %v224 = vmul.f32 %v201, %v211
        %v225 = vmul.f32 %v204, %v211
        %v226 = vmul.f32 %v207, %v211
        %v227 = vmul.f32 %v210, %v211
        %v228 = vsub.f32 %v146, %v212
        %v229 = vsub.f32 %v147, %v213
        %v230 = vsub.f32 %v148, %v214
        %v231 = vsub.f32 %v149, %v215
        %v232 = vsub.f32 %v150, %v216
        %v233 = vsub.f32 %v151, %v217
        %v234 = vsub.f32 %v152, %v218
        %v235 = vsub.f32 %v153, %v219
        %v236 = vsub.f32 %v154, %v220
        %v237 = vsub.f32 %v155, %v221
        %v238 = vsub.f32 %v156, %v222
        %v239 = vsub.f32 %v157, %v223
        %v240 = vsub.f32 %v158, %v224
        %v241 = vsub.f32 %v159, %v225
        %v242 = vsub.f32 %v160, %v226
        %v243 = vsub.f32 %v161, %v227
        %v244 = vmul.f32 %v228, %v228
        %v245 = vmul.f32 %v229, %v229
        %v246 = vmul.f32 %v230, %v230
        %v247 = vmul.f32 %v231, %v231
        %v248 = vmul.f32 %v232, %v232
        %v249 = vmul.f32 %v233, %v233
        %v250 = vmul.f32 %v234, %v234
        %v251 = vmul.f32 %v235, %v235
        %v252 = vmul.f32 %v236, %v236
        %v253 = vmul.f32 %v237, %v237
        %v254 = vmul.f32 %v238, %v238
        %v255 = vmul.f32 %v239, %v239
        %v256 = vmul.f32 %v240, %v240
        %v257 = vmul.f32 %v241, %v241
        %v258 = vmul.f32 %v242, %v242
        %v259 = vmul.f32 %v243, %v243
        %v260 = vsel %vm162, %v244, 0.0
        %261 = vadd.xlane.f32.xlu0 %v260
        %v262 = vpop.xlane.xlu0 %261
        %v263 = vsel %vm162, %v245, 0.0
        %264 = vadd.xlane.f32.xlu0 %v263
        %v265 = vpop.xlane.xlu0 %264
        %v266 = vsel %vm162, %v246, 0.0
        %267 = vadd.xlane.f32.xlu0 %v266
        %v268 = vpop.xlane.xlu0 %267
        %v269 = vsel %vm162, %v247, 0.0
        %270 = vadd.xlane.f32.xlu0 %v269
        %v271 = vpop.xlane.xlu0 %270
        %v272 = vsel %vm162, %v248, 0.0
        %273 = vadd.xlane.f32.xlu0 %v272
        %v274 = vpop.xlane.xlu0 %273
        %v275 = vsel %vm162, %v249, 0.0
        %276 = vadd.xlane.f32.xlu0 %v275
        %v277 = vpop.xlane.xlu0 %276
        %v278 = vsel %vm162, %v250, 0.0
        %279 = vadd.xlane.f32.xlu0 %v278
        %v280 = vpop.xlane.xlu0 %279
        %v281 = vsel %vm162, %v251, 0.0
        %282 = vadd.xlane.f32.xlu0 %v281
        %v283 = vpop.xlane.xlu0 %282
        %v284 = vsel %vm162, %v252, 0.0
        %285 = vadd.xlane.f32.xlu0 %v284
        %v286 = vpop.xlane.xlu0 %285
        %v287 = vsel %vm162, %v253, 0.0
        %288 = vadd.xlane.f32.xlu0 %v287
        %v289 = vpop.xlane.xlu0 %288
        %v290 = vsel %vm162, %v254, 0.0
        %291 = vadd.xlane.f32.xlu0 %v290
        %v292 = vpop.xlane.xlu0 %291
        %v293 = vsel %vm162, %v255, 0.0
        %294 = vadd.xlane.f32.xlu0 %v293
        %v295 = vpop.xlane.xlu0 %294
        %v296 = vsel %vm162, %v256, 0.0
        %297 = vadd.xlane.f32.xlu0 %v296
        %v298 = vpop.xlane.xlu0 %297
        %v299 = vsel %vm162, %v257, 0.0
        %300 = vadd.xlane.f32.xlu0 %v299
        %v301 = vpop.xlane.xlu0 %300
        %v302 = vsel %vm162, %v258, 0.0
        %303 = vadd.xlane.f32.xlu0 %v302
        %v304 = vpop.xlane.xlu0 %303
        %v305 = vsel %vm162, %v259, 0.0
        %306 = vadd.xlane.f32.xlu0 %v305
        %v307 = vpop.xlane.xlu0 %306
        %v308 = vrsqrt.pop %v262
        %v309 = vrsqrt.pop %v265
        %v310 = vrsqrt.pop %v268
        %v311 = vrsqrt.pop %v271
        %v312 = vrsqrt.pop %v274
        %v313 = vrsqrt.pop %v277
        %v314 = vrsqrt.pop %v280
        %v315 = vrsqrt.pop %v283
        %v316 = vrsqrt.pop %v286
        %v317 = vrsqrt.pop %v289
        %v318 = vrsqrt.pop %v292
        %v319 = vrsqrt.pop %v295
        %v320 = vrsqrt.pop %v298
        %v321 = vrsqrt.pop %v301
        %v322 = vrsqrt.pop %v304
        %v323 = vrsqrt.pop %v307
        %v324 = vmul.f32 %v308, 0.75
        %v325 = vmul.f32 %v309, 0.75
        %v326 = vmul.f32 %v310, 0.75
        %v327 = vmul.f32 %v311, 0.75
        %v328 = vmul.f32 %v312, 0.75
        %v329 = vmul.f32 %v313, 0.75
        %v330 = vmul.f32 %v314, 0.75
        %v331 = vmul.f32 %v315, 0.75
        %v332 = vmul.f32 %v316, 0.75
        %v333 = vmul.f32 %v317, 0.75
        %v334 = vmul.f32 %v318, 0.75
        %v335 = vmul.f32 %v319, 0.75
        %v336 = vmul.f32 %v320, 0.75
        %v337 = vmul.f32 %v321, 0.75
        %v338 = vmul.f32 %v322, 0.75
        %v339 = vmul.f32 %v323, 0.75
        %v340 = vmul.f32 %v228, %v324
        %v341 = vmul.f32 %v229, %v325
        %v342 = vmul.f32 %v230, %v326
        %v343 = vmul.f32 %v231, %v327
        %v344 = vmul.f32 %v232, %v328
        %v345 = vmul.f32 %v233, %v329
        %v346 = vmul.f32 %v234, %v330
        %v347 = vmul.f32 %v235, %v331
        %v348 = vmul.f32 %v236, %v332
        %v349 = vmul.f32 %v237, %v333
        %v350 = vmul.f32 %v238, %v334
        %v351 = vmul.f32 %v239, %v335
        %v352 = vmul.f32 %v240, %v336
        %v353 = vmul.f32 %v241, %v337
        %v354 = vmul.f32 %v242, %v338
        %v355 = vmul.f32 %v243, %v339
        %v356 = vpack.c.bf16 %v341, %v340
        %v357 = vpack.c.bf16 %v343, %v342
        %v358 = vpack.c.bf16 %v345, %v344
        %v359 = vpack.c.bf16 %v347, %v346
        %v360 = vpack.c.bf16 %v349, %v348
        %v361 = vpack.c.bf16 %v351, %v350
        %v362 = vpack.c.bf16 %v353, %v352
        %v363 = vpack.c.bf16 %v355, %v354
        %v364 = vld [vmem:[%s1] sm:$0xff]
        %v365 = vld [vmem:[%s1 + $0x8] sm:$0xff]
        %v366 = vld [vmem:[%s1 + $0x10] sm:$0xff]
        %v367 = vld [vmem:[%s1 + $0x18] sm:$0xff]
        %v368 = vld [vmem:[%s1 + $0x20] sm:$0xff]
        %v369 = vld [vmem:[%s1 + $0x28] sm:$0xff]
        %v370 = vld [vmem:[%s1 + $0x30] sm:$0xff]
        %v371 = vld [vmem:[%s1 + $0x38] sm:$0xff]
        %v372 = vld [vmem:[%s1 + $0x40] sm:$0xff]
        %v373 = vld [vmem:[%s1 + $0x48] sm:$0xff]
        %v374 = vld [vmem:[%s1 + $0x50] sm:$0xff]
        %v375 = vld [vmem:[%s1 + $0x58] sm:$0xff]
        %v376 = vld [vmem:[%s1 + $0x60] sm:$0xff]
        %v377 = vld [vmem:[%s1 + $0x68] sm:$0xff]
        %v378 = vld [vmem:[%s1 + $0x70] sm:$0xff]
        %v379 = vld [vmem:[%s1 + $0x78] sm:$0xff]
        %v380 = vsel %vm162, %v364, 0.0
        %381 = vadd.xlane.f32.xlu0 %v380
        %v382 = vpop.xlane.xlu0 %381
        %v383 = vsel %vm162, %v365, 0.0
        %384 = vadd.xlane.f32.xlu0 %v383
        %v385 = vpop.xlane.xlu0 %384
        %v386 = vsel %vm162, %v366, 0.0
        %387 = vadd.xlane.f32.xlu0 %v386
        %v388 = vpop.xlane.xlu0 %387
        %v389 = vsel %vm162, %v367, 0.0
        %390 = vadd.xlane.f32.xlu0 %v389
        %v391 = vpop.xlane.xlu0 %390
        %v392 = vsel %vm162, %v368, 0.0
        %393 = vadd.xlane.f32.xlu0 %v392
        %v394 = vpop.xlane.xlu0 %393
        %v395 = vsel %vm162, %v369, 0.0
        %396 = vadd.xlane.f32.xlu0 %v395
        %v397 = vpop.xlane.xlu0 %396
        %v398 = vsel %vm162, %v370, 0.0
        %399 = vadd.xlane.f32.xlu0 %v398
        %v400 = vpop.xlane.xlu0 %399
        %v401 = vsel %vm162, %v371, 0.0
        %402 = vadd.xlane.f32.xlu0 %v401
        %v403 = vpop.xlane.xlu0 %402
        %v404 = vsel %vm162, %v372, 0.0
        %405 = vadd.xlane.f32.xlu0 %v404
        %v406 = vpop.xlane.xlu0 %405
        %v407 = vsel %vm162, %v373, 0.0
        %408 = vadd.xlane.f32.xlu0 %v407
        %v409 = vpop.xlane.xlu0 %408
        %v410 = vsel %vm162, %v374, 0.0
        %411 = vadd.xlane.f32.xlu0 %v410
        %v412 = vpop.xlane.xlu0 %411
        %v413 = vsel %vm162, %v375, 0.0
        %414 = vadd.xlane.f32.xlu0 %v413
        %v415 = vpop.xlane.xlu0 %414
        %v416 = vsel %vm162, %v376, 0.0
        %417 = vadd.xlane.f32.xlu0 %v416
        %v418 = vpop.xlane.xlu0 %417
        %v419 = vsel %vm162, %v377, 0.0
        %420 = vadd.xlane.f32.xlu0 %v419
        %v421 = vpop.xlane.xlu0 %420
        %v422 = vsel %vm162, %v378, 0.0
        %423 = vadd.xlane.f32.xlu0 %v422
        %v424 = vpop.xlane.xlu0 %423
        %v425 = vsel %vm162, %v379, 0.0
        %426 = vadd.xlane.f32.xlu0 %v425
        %v427 = vpop.xlane.xlu0 %426
        %v428 = vmul.f32 %v382, %v211
        %v429 = vmul.f32 %v385, %v211
        %v430 = vmul.f32 %v388, %v211
        %v431 = vmul.f32 %v391, %v211
        %v432 = vmul.f32 %v394, %v211
        %v433 = vmul.f32 %v397, %v211
        %v434 = vmul.f32 %v400, %v211
        %v435 = vmul.f32 %v403, %v211
        %v436 = vmul.f32 %v406, %v211
        %v437 = vmul.f32 %v409, %v211
        %v438 = vmul.f32 %v412, %v211
        %v439 = vmul.f32 %v415, %v211
        %v440 = vmul.f32 %v418, %v211
        %v441 = vmul.f32 %v421, %v211
        %v442 = vmul.f32 %v424, %v211
        %v443 = vmul.f32 %v427, %v211
        %v444 = vsub.f32 %v364, %v428
        %v445 = vsub.f32 %v365, %v429
        %v446 = vsub.f32 %v366, %v430
        %v447 = vsub.f32 %v367, %v431
        %v448 = vsub.f32 %v368, %v432
        %v449 = vsub.f32 %v369, %v433
        %v450 = vsub.f32 %v370, %v434
        %v451 = vsub.f32 %v371, %v435
        %v452 = vsub.f32 %v372, %v436
        %v453 = vsub.f32 %v373, %v437
        %v454 = vsub.f32 %v374, %v438
        %v455 = vsub.f32 %v375, %v439
        %v456 = vsub.f32 %v376, %v440
        %v457 = vsub.f32 %v377, %v441
        %v458 = vsub.f32 %v378, %v442
        %v459 = vsub.f32 %v379, %v443
        %v460 = vmul.f32 %v444, %v444
        %v461 = vmul.f32 %v445, %v445
        %v462 = vmul.f32 %v446, %v446
        %v463 = vmul.f32 %v447, %v447
        %v464 = vmul.f32 %v448, %v448
        %v465 = vmul.f32 %v449, %v449
        %v466 = vmul.f32 %v450, %v450
        %v467 = vmul.f32 %v451, %v451
        %v468 = vmul.f32 %v452, %v452
        %v469 = vmul.f32 %v453, %v453
        %v470 = vmul.f32 %v454, %v454
        %v471 = vmul.f32 %v455, %v455
        %v472 = vmul.f32 %v456, %v456
        %v473 = vmul.f32 %v457, %v457
        %v474 = vmul.f32 %v458, %v458
        %v475 = vmul.f32 %v459, %v459
        %v476 = vsel %vm162, %v460, 0.0
        %477 = vadd.xlane.f32.xlu0 %v476
        %v478 = vpop.xlane.xlu0 %477
        %v479 = vsel %vm162, %v461, 0.0
        %480 = vadd.xlane.f32.xlu0 %v479
        %v481 = vpop.xlane.xlu0 %480
        %v482 = vsel %vm162, %v462, 0.0
        %483 = vadd.xlane.f32.xlu0 %v482
        %v484 = vpop.xlane.xlu0 %483
        %v485 = vsel %vm162, %v463, 0.0
        %486 = vadd.xlane.f32.xlu0 %v485
        %v487 = vpop.xlane.xlu0 %486
        %v488 = vsel %vm162, %v464, 0.0
        %489 = vadd.xlane.f32.xlu0 %v488
        %v490 = vpop.xlane.xlu0 %489
        %v491 = vsel %vm162, %v465, 0.0
        %492 = vadd.xlane.f32.xlu0 %v491
        %v493 = vpop.xlane.xlu0 %492
        %v494 = vsel %vm162, %v466, 0.0
        %495 = vadd.xlane.f32.xlu0 %v494
        %v496 = vpop.xlane.xlu0 %495
        %v497 = vsel %vm162, %v467, 0.0
        %498 = vadd.xlane.f32.xlu0 %v497
        %v499 = vpop.xlane.xlu0 %498
        %v500 = vsel %vm162, %v468, 0.0
        %501 = vadd.xlane.f32.xlu0 %v500
        %v502 = vpop.xlane.xlu0 %501
        %v503 = vsel %vm162, %v469, 0.0
        %504 = vadd.xlane.f32.xlu0 %v503
        %v505 = vpop.xlane.xlu0 %504
        %v506 = vsel %vm162, %v470, 0.0
        %507 = vadd.xlane.f32.xlu0 %v506
        %v508 = vpop.xlane.xlu0 %507
        %v509 = vsel %vm162, %v471, 0.0
        %510 = vadd.xlane.f32.xlu0 %v509
        %v511 = vpop.xlane.xlu0 %510
        %v512 = vsel %vm162, %v472, 0.0
        %513 = vadd.xlane.f32.xlu0 %v512
        %v514 = vpop.xlane.xlu0 %513
        %v515 = vsel %vm162, %v473, 0.0
        %516 = vadd.xlane.f32.xlu0 %v515
        %v517 = vpop.xlane.xlu0 %516
        %v518 = vsel %vm162, %v474, 0.0
        %519 = vadd.xlane.f32.xlu0 %v518
        %v520 = vpop.xlane.xlu0 %519
        %v521 = vsel %vm162, %v475, 0.0
        %522 = vadd.xlane.f32.xlu0 %v521
        %v523 = vpop.xlane.xlu0 %522
        %v524 = vrsqrt.pop %v478
        %v525 = vrsqrt.pop %v481
        %v526 = vrsqrt.pop %v484
        %v527 = vrsqrt.pop %v487
        %v528 = vrsqrt.pop %v490
        %v529 = vrsqrt.pop %v493
        %v530 = vrsqrt.pop %v496
        %v531 = vrsqrt.pop %v499
        %v532 = vrsqrt.pop %v502
        %v533 = vrsqrt.pop %v505
        %v534 = vrsqrt.pop %v508
        %v535 = vrsqrt.pop %v511
        %v536 = vrsqrt.pop %v514
        %v537 = vrsqrt.pop %v517
        %v538 = vrsqrt.pop %v520
        %v539 = vrsqrt.pop %v523
        %v540 = vmul.f32 %v444, %v524
        %v541 = vmul.f32 %v445, %v525
        %v542 = vmul.f32 %v446, %v526
        %v543 = vmul.f32 %v447, %v527
        %v544 = vmul.f32 %v448, %v528
        %v545 = vmul.f32 %v449, %v529
        %v546 = vmul.f32 %v450, %v530
        %v547 = vmul.f32 %v451, %v531
        %v548 = vmul.f32 %v452, %v532
        %v549 = vmul.f32 %v453, %v533
        %v550 = vmul.f32 %v454, %v534
        %v551 = vmul.f32 %v455, %v535
        %v552 = vmul.f32 %v456, %v536
        %v553 = vmul.f32 %v457, %v537
        %v554 = vmul.f32 %v458, %v538
        %v555 = vmul.f32 %v459, %v539
        %v556 = vpack.c.bf16 %v541, %v540
        %v557 = vpack.c.bf16 %v543, %v542
        %v558 = vpack.c.bf16 %v545, %v544
        %v559 = vpack.c.bf16 %v547, %v546
        %v560 = vpack.c.bf16 %v549, %v548
        %v561 = vpack.c.bf16 %v551, %v550
        %v562 = vpack.c.bf16 %v553, %v552
        %v563 = vpack.c.bf16 %v555, %v554
        %v565 = vsel %vm162, %v356, 0
        %v568 = vsel %vm162, %v357, 0
        %v571 = vsel %vm162, %v358, 0
        %v574 = vsel %vm162, %v359, 0
        %v577 = vsel %vm162, %v360, 0
        %v580 = vsel %vm162, %v361, 0
        %v583 = vsel %vm162, %v362, 0
        %v586 = vsel %vm162, %v363, 0
        %v589 = vsel %vm162, %v556, 0
        %v592 = vsel %vm162, %v557, 0
        %v595 = vsel %vm162, %v558, 0
        %v598 = vsel %vm162, %v559, 0
        %v601 = vsel %vm162, %v560, 0
        %v604 = vsel %vm162, %v561, 0
        %v607 = vsel %vm162, %v562, 0
        %v610 = vsel %vm162, %v563, 0
        %612 = vmatprep.subr.bf16.mxu0 0
        %613 = vmatpush1.bf16.xpose.msra.mxu0 %v589
        %614 = vmatprep.subr.bf16.mxu0 0
        %615 = vmatpush1.bf16.xpose.msra.mxu0 %v592
        %616 = vmatprep.subr.bf16.mxu0 0
        %617 = vmatpush1.bf16.xpose.msra.mxu0 %v595
        %618 = vmatprep.subr.bf16.mxu0 0
        %619 = vmatpush1.bf16.xpose.msra.mxu0 %v598
        %620 = vmatprep.subr.bf16.mxu0 0
        %621 = vmatpush1.bf16.xpose.msra.mxu0 %v601
        %622 = vmatprep.subr.bf16.mxu0 0
        %623 = vmatpush1.bf16.xpose.msra.mxu0 %v604
        %624 = vmatprep.subr.bf16.mxu0 0
        %625 = vmatpush1.bf16.xpose.msra.mxu0 %v607
        %626 = vmatprep.subr.bf16.mxu0 0
        %627 = vmatpush1.bf16.xpose.msra.mxu0 %v610
        %628 = vmatprep.subr.bf16.mxu0 0
        %629 = vmatpush1.bf16.xpose.msra.mxu0 0
        %630 = vmatprep.subr.bf16.mxu0 0
        %631 = vmatpush1.bf16.xpose.msra.mxu0 0
        %632 = vmatprep.subr.bf16.mxu0 0
        %633 = vmatpush1.bf16.xpose.msra.mxu0 0
        %634 = vmatprep.subr.bf16.mxu0 0
        %635 = vmatpush1.bf16.xpose.msra.mxu0 0
        %636 = vmatprep.subr.bf16.mxu0 0
        %637 = vmatpush1.bf16.xpose.msra.mxu0 0
        %638 = vmatprep.subr.bf16.mxu0 0
        %639 = vmatpush1.bf16.xpose.msra.mxu0 0
        %640 = vmatprep.subr.bf16.mxu0 0
        %641 = vmatpush1.bf16.xpose.msra.mxu0 0
        %642 = vmatprep.subr.bf16.mxu0 0
        %643 = vmatpush1.bf16.xpose.msra.mxu0 0
        %644 = vmatprep.mubr.bf16.mxu0 0
        %645 = vmatmul.mubr.bf16.gmra.mrb[0].mxu0 %v565
        %v646 = vpop.f32.mrb[0].mxu0
        %v647 = vadd.f32 0.0, %v646
        %v648 = vpop.f32.mrb[0].mxu0
        %v649 = vpop.f32.mrb[0].mxu0
        %v650 = vadd.f32 0.0, %v649
        %v651 = vpop.f32.mrb[0].mxu0
        %652 = vmatprep.mubr.bf16.mxu0 0
        %653 = vmatmul.mubr.bf16.gmra.mrb[0].mxu0 %v568
        %v654 = vpop.f32.mrb[0].mxu0
        %v655 = vadd.f32 0.0, %v654
        %v656 = vpop.f32.mrb[0].mxu0
        %v657 = vpop.f32.mrb[0].mxu0
        %v658 = vadd.f32 0.0, %v657
        %v659 = vpop.f32.mrb[0].mxu0
        %660 = vmatprep.mubr.bf16.mxu0 0
        %661 = vmatmul.mubr.bf16.gmra.mrb[0].mxu0 %v571
        %v662 = vpop.f32.mrb[0].mxu0
        %v663 = vadd.f32 0.0, %v662
        %v664 = vpop.f32.mrb[0].mxu0
        %v665 = vpop.f32.mrb[0].mxu0
        %v666 = vadd.f32 0.0, %v665
        %v667 = vpop.f32.mrb[0].mxu0
        %668 = vmatprep.mubr.bf16.mxu0 0
        %669 = vmatmul.mubr.bf16.gmra.mrb[0].mxu0 %v574
        %v670 = vpop.f32.mrb[0].mxu0
        %v671 = vadd.f32 0.0, %v670
        %v672 = vpop.f32.mrb[0].mxu0
        %v673 = vpop.f32.mrb[0].mxu0
        %v674 = vadd.f32 0.0, %v673
        %v675 = vpop.f32.mrb[0].mxu0
        %676 = vmatprep.mubr.bf16.mxu0 0
        %677 = vmatmul.mubr.bf16.gmra.mrb[0].mxu0 %v577
        %v678 = vpop.f32.mrb[0].mxu0
        %v679 = vadd.f32 0.0, %v678
        %v680 = vpop.f32.mrb[0].mxu0
        %v681 = vpop.f32.mrb[0].mxu0
        %v682 = vadd.f32 0.0, %v681
        %v683 = vpop.f32.mrb[0].mxu0
        %684 = vmatprep.mubr.bf16.mxu0 0
        %685 = vmatmul.mubr.bf16.gmra.mrb[0].mxu0 %v580
        %v686 = vpop.f32.mrb[0].mxu0
        %v687 = vadd.f32 0.0, %v686
        %v688 = vpop.f32.mrb[0].mxu0
        %v689 = vpop.f32.mrb[0].mxu0
        %v690 = vadd.f32 0.0, %v689
        %v691 = vpop.f32.mrb[0].mxu0
        %692 = vmatprep.mubr.bf16.mxu0 0
        %693 = vmatmul.mubr.bf16.gmra.mrb[0].mxu0 %v583
        %v694 = vpop.f32.mrb[0].mxu0
        %v695 = vadd.f32 0.0, %v694
        %v696 = vpop.f32.mrb[0].mxu0
        %v697 = vpop.f32.mrb[0].mxu0
        %v698 = vadd.f32 0.0, %v697
        %v699 = vpop.f32.mrb[0].mxu0
        %700 = vmatprep.mubr.bf16.mxu0 0
        %701 = vmatmul.mubr.bf16.gmra.mrb[0].mxu0 %v586
        %v702 = vpop.f32.mrb[0].mxu0
        %v703 = vadd.f32 0.0, %v702
        %v704 = vpop.f32.mrb[0].mxu0
        %v705 = vpop.f32.mrb[0].mxu0
        %v706 = vadd.f32 0.0, %v705
        %v707 = vpop.f32.mrb[0].mxu0
        %708 = vdwg.mxu0
        %709 = vst [vmem:[%s137] sm:$0xff] %v647
        %710 = vst [vmem:[%s137 + $0x8] sm:$0xff] %v650
        %711 = vst [vmem:[%s137 + $0x10] sm:$0xff] %v655
        %712 = vst [vmem:[%s137 + $0x18] sm:$0xff] %v658
        %713 = vst [vmem:[%s137 + $0x20] sm:$0xff] %v663
        %714 = vst [vmem:[%s137 + $0x28] sm:$0xff] %v666
        %715 = vst [vmem:[%s137 + $0x30] sm:$0xff] %v671
        %716 = vst [vmem:[%s137 + $0x38] sm:$0xff] %v674
        %717 = vst [vmem:[%s137 + $0x40] sm:$0xff] %v679
        %718 = vst [vmem:[%s137 + $0x48] sm:$0xff] %v682
        %719 = vst [vmem:[%s137 + $0x50] sm:$0xff] %v687
        %720 = vst [vmem:[%s137 + $0x58] sm:$0xff] %v690
        %721 = vst [vmem:[%s137 + $0x60] sm:$0xff] %v695
        %722 = vst [vmem:[%s137 + $0x68] sm:$0xff] %v698
        %723 = vst [vmem:[%s137 + $0x70] sm:$0xff] %v703
        %724 = vst [vmem:[%s137 + $0x78] sm:$0xff] %v706
        %s725 = sand.u32 %s71, 1
        %s726 = scalar_lea.sflag [#allocation3], %s725
        %s727 = sand.u32 %s71, 1
        %s728 = smul.addr %s727, 128
        %s729 = scalar_lea.vmem [#allocation2], %s728
        // Predicated region
        $region29: #{tpu_custom_call.1} parent=27 // pred_check
          %p730 = pneg %p81
        $region30: #{tpu_custom_call.1} parent=27 // pred_check_branch
          %732 = sbr.rel (%p730) target = $region32
        $region31: #{tpu_custom_call.1} parent=27 // pred_region
          %s733 = smul.u32 16, %s16
          %s735 = ssub.s32 2048, 2048
          %736 = vsyncadd %s726, %s735
          %s737 = smul.addr %s733, 128
          %s738 = scalar_lea.hbm %s2, %s737
          %s739 = sshll.u32 %s729, 4
          %s740 = int_to_ptr.vmem [resolvable:$true] %s739
          %745 = dma.vmem_to_hbm [thread:$0]  %s740, 2048, %s738, %s726, 128, 128, 8
        $region32: #{tpu_custom_call.1} parent=27 // pred_fallthru
          _
      $region28: #{tpu_custom_call.1} parent=5 // pred_fallthru
        _
      %p746 = scmp.le.s32.totalorder 2, %s11
      // Predicated region
      $region33: #{tpu_custom_call.1} parent=5 // pred_check
        %p747 = pneg %p746
      $region34: #{tpu_custom_call.1} parent=5 // pred_check_branch
        %749 = sbr.rel (%p747) target = $region36
      $region35: #{tpu_custom_call.1} parent=5 // pred_region
        %s750 = ssub.s32 %s11, 2
        // Predicated region
        $region37: #{tpu_custom_call.1} parent=35 // pred_check
          %p751 = pneg %p87
        $region38: #{tpu_custom_call.1} parent=35 // pred_check_branch
          %753 = sbr.rel (%p751) target = $region40
        $region39: #{tpu_custom_call.1} parent=35 // pred_region
          %s754 = sand.u32 %s72, 1
          %s755 = scalar_lea.sflag [#allocation3], %s754
          %s756 = sand.u32 %s72, 1
          %s757 = smul.addr %s756, 128
          %s758 = scalar_lea.vmem [#allocation2], %s757
          %759 = dma.done %s755, 2048
        $region40: #{tpu_custom_call.1} parent=35 // pred_fallthru
          _
      $region36: #{tpu_custom_call.1} parent=5 // pred_fallthru
        _
    $region6: #{tpu_custom_call.1} parent=1 // loop_footer
      %s15 = sadd.s32 1, %s11
    $region7: #{tpu_custom_call.1} parent=1 // loop_footer_branch
      %10 = sbr.rel target = $region3
    $region8: #{tpu_custom_call.1} parent=1 // loop_exit
      _
    %760 = vsyncpa [#allocation3], 1
    %s761 = scalar_lea.sflag [#allocation3], 1
    %762 = vsyncpa %s761, 1

</llo_original>
